<compile_context>
chip_gen: v6e
topology: v6e:2x2x1
jax: 0.10.0
libtpu: 0.0.40
codegen_flags: <defaults>
</compile_context>

<pallas_src>
import jax
import jax.numpy as jnp
from jax.experimental import pallas as pl
from jax.experimental.pallas import tpu as pltpu

# ---- config (small, consistent with the module) ----
B = 2               # batch
S = 8               # seq_len
D = 32              # embedding_dimension
H = 4               # num_attention_heads
HD = D // H         # head_dim
MLP_RATIO = 4
HIDDEN = D * MLP_RATIO
EPS = 1e-5          # layer_norm_eps
N = B * S           # rows after folding batch into the sequence dim
HN = H * N          # head-stacked row count (64)


def _layer_norm(x, gamma, beta):
    mu = jnp.mean(x, axis=-1, keepdims=True)
    var = jnp.mean((x - mu) ** 2, axis=-1, keepdims=True)
    return (x - mu) * jax.lax.rsqrt(var + EPS) * gamma + beta


def _erf(x):
    # Abramowitz & Stegun 7.1.26, max abs err ~1.5e-7; built only from ops that
    # are guaranteed to lower in Mosaic (abs, exp, mul/add, where).
    a1, a2, a3, a4, a5 = 0.254829592, -0.284496736, 1.421413741, -1.453152027, 1.061405429
    pcoef = 0.3275911
    ax = jnp.abs(x)
    t = 1.0 / (1.0 + pcoef * ax)
    poly = t * (a1 + t * (a2 + t * (a3 + t * (a4 + t * a5))))
    y = 1.0 - poly * jnp.exp(-ax * ax)
    return jnp.where(x >= 0.0, y, -y)


def _gelu_exact(x):
    return 0.5 * x * (1.0 + _erf(x * 0.7071067811865476))


def encoder_layer_kernel(x_ref, w_slab_ref, w_out_ref, misc_ref, out_ref):
    f32, bf16 = jnp.float32, jnp.bfloat16

    x = x_ref[...]                          # (N, D) f32
    w_slab = w_slab_ref[...]                # (D, 8D) bf16 = [Wq|Wk|Wv|Wo|Wi]
    w_out = w_out_ref[...]                  # (HIDDEN, D) bf16
    misc = misc_ref[...]                    # (8 + HN, 128) f32

    b_qkv = misc[0:1, :]                    # full 128-lane fused [bq|bk|bv|0] bias row
    bo    = misc[1:2, :D]
    ln1_g = misc[2:3, :D]
    ln1_b = misc[3:4, :D]
    bi    = misc[4:5, :HIDDEN]              # full 128-lane FFN intermediate bias
    bo2   = misc[5:6, :D]
    ln2_g = misc[6:7, :D]
    ln2_b = misc[7:8, :D]
    mask  = misc[8:8 + HN, :HN]             # (HN, HN) block-diagonal head+batch mask

    x_bf = x.astype(bf16)

    # ---- fused QKV(+unused Wo lanes) projection: ONE full-128-lane MXU dot ----
    qkv = jnp.dot(x_bf, w_slab[:, :4 * D], preferred_element_type=f32) + b_qkv   # (N, 4D)
    qkv_bf = qkv.astype(bf16)

    # ---- head-stacked relayout: (N, H*HD) lane blocks -> (H*N, HD) sublane blocks ----
    q_st = jnp.concatenate([qkv_bf[:, h * HD:(h + 1) * HD] for h in range(H)], axis=0)
    k_st = jnp.concatenate([qkv_bf[:, D + h * HD:D + (h + 1) * HD] for h in range(H)], axis=0)
    v_st = jnp.concatenate([qkv_bf[:, 2 * D + h * HD:2 * D + (h + 1) * HD] for h in range(H)], axis=0)

    # ---- ONE score dot for all heads & batches + ONE softmax ----
    s = jax.lax.dot_general(q_st, k_st, (((1,), (1,)), ((), ())),
                            preferred_element_type=f32)                          # (HN, HN)
    s = s * (1.0 / (HD ** 0.5)) + mask
    s = s - jnp.max(s, axis=-1, keepdims=True)
    p = jnp.exp(s)
    p = p / jnp.sum(p, axis=-1, keepdims=True)        # exact divide (cheap, tighter numerics)

    # ---- ONE PV dot, relayout back, ONE fused output projection ----
    ctx_st = jnp.dot(p.astype(bf16), v_st, preferred_element_type=f32)           # (HN, HD)
    ctx = jnp.concatenate([ctx_st[h * N:(h + 1) * N, :] for h in range(H)], axis=1)  # (N, D)
    attn = jnp.dot(ctx.astype(bf16), w_slab[:, 3 * D:4 * D],
                   preferred_element_type=f32) + bo

    # dropout(p) is identity in eval mode
    h1 = _layer_norm(x + attn, ln1_g, ln1_b)

    # ---- feed-forward ----
    f = jnp.dot(h1.astype(bf16), w_slab[:, 4 * D:], preferred_element_type=f32) + bi  # (N, HIDDEN)
    f = _gelu_exact(f)
    ffn = jnp.dot(f.astype(bf16), w_out, preferred_element_type=f32) + bo2

    out_ref[...] = _layer_norm(h1 + ffn, ln2_g, ln2_b)


def pack_params(p):
    """Pack module parameters into MXU/DMA-friendly slabs (done once, offline)."""
    w_attn = jnp.concatenate([p["wq"], p["wk"], p["wv"], p["wo"]], axis=1)        # (D, 4D)
    w_slab = jnp.concatenate([w_attn, p["wi"]], axis=1).astype(jnp.bfloat16)       # (D, 8D)
    w_out = p["wo2"].astype(jnp.bfloat16)                                          # (HIDDEN, D)

    def row(v):  # (1, n) -> (1, 128) zero-padded f32 row
        v = v.astype(jnp.float32)
        return jnp.pad(v, ((0, 0), (0, 128 - v.shape[1])))

    vec_rows = jnp.concatenate(
        [
            row(jnp.concatenate([p["bq"], p["bk"], p["bv"]], axis=1)),  # 0: fused QKV bias
            row(p["bo"]),                                               # 1: attn out-proj bias
            row(p["ln1_g"]), row(p["ln1_b"]),                           # 2,3: LayerNorm 1
            row(p["bi"]),                                               # 4: FFN intermediate bias
            row(p["bo2"]),                                              # 5: FFN output bias
            row(p["ln2_g"]), row(p["ln2_b"]),                           # 6,7: final LayerNorm
        ],
        axis=0,
    )                                                                   # (8, 128)

    # Block-diagonal head+batch mask for the head-stacked (HN, HN) score matrix.
    r = jnp.arange(HN)
    same_head = (r[:, None] // N) == (r[None, :] // N)
    same_batch = ((r[:, None] % N) // S) == ((r[None, :] % N) // S)
    mask = jnp.where(same_head & same_batch, 0.0, -1e30).astype(jnp.float32)       # (HN, HN)
    mask = jnp.pad(mask, ((0, 0), (0, 128 - HN)))                                  # (HN, 128)

    misc = jnp.concatenate([vec_rows, mask], axis=0)                               # (8+HN, 128)
    return w_slab, w_out, misc


def roberta_encoder_layer(x, packed):
    """x: (B, S, D) float32. packed: output of pack_params."""
    w_slab, w_out, misc = packed
    x2d = x.reshape(N, D)
    out2d = pl.pallas_call(
        encoder_layer_kernel,
        out_shape=jax.ShapeDtypeStruct((N, D), jnp.float32),
        # whole problem (~90 KB) fits in VMEM: single invocation, no grid / no tiling
        in_specs=[pl.BlockSpec(memory_space=pltpu.MemorySpace.VMEM)] * 4,
        out_specs=pl.BlockSpec(memory_space=pltpu.MemorySpace.VMEM),
    )(x2d, w_slab, w_out, misc)
    return out2d.reshape(B, S, D)


def init_params(key):
    """Deterministic synthetic parameters matching the PyTorch module's shapes."""
    keys = jax.random.split(key, 16)
    std = 0.02
    return {
        "wq": jax.random.normal(keys[0], (D, D), jnp.float32) * std,
        "bq": jax.random.normal(keys[1], (1, D), jnp.float32) * std,
        "wk": jax.random.normal(keys[2], (D, D), jnp.float32) * std,
        "bk": jax.random.normal(keys[3], (1, D), jnp.float32) * std,
        "wv": jax.random.normal(keys[4], (D, D), jnp.float32) * std,
        "bv": jax.random.normal(keys[5], (1, D), jnp.float32) * std,
        "wo": jax.random.normal(keys[6], (D, D), jnp.float32) * std,
        "bo": jax.random.normal(keys[7], (1, D), jnp.float32) * std,
        "ln1_g": 1.0 + jax.random.normal(keys[8], (1, D), jnp.float32) * 0.1,
        "ln1_b": jax.random.normal(keys[9], (1, D), jnp.float32) * 0.1,
        "wi": jax.random.normal(keys[10], (D, HIDDEN), jnp.float32) * std,
        "bi": jax.random.normal(keys[11], (1, HIDDEN), jnp.float32) * std,
        "wo2": jax.random.normal(keys[12], (HIDDEN, D), jnp.float32) * std,
        "bo2": jax.random.normal(keys[13], (1, D), jnp.float32) * std,
        "ln2_g": 1.0 + jax.random.normal(keys[14], (1, D), jnp.float32) * 0.1,
        "ln2_b": jax.random.normal(keys[15], (1, D), jnp.float32) * 0.1,
    }


def reference_jax(x, p):
    """Pure-JAX f32 reference of the same forward pass (sanity check)."""
    q = x @ p["wq"] + p["bq"]
    k = x @ p["wk"] + p["bk"]
    v = x @ p["wv"] + p["bv"]
    q = q.reshape(B, S, H, HD).transpose(0, 2, 1, 3)
    k = k.reshape(B, S, H, HD).transpose(0, 2, 1, 3)
    v = v.reshape(B, S, H, HD).transpose(0, 2, 1, 3)
    s = jnp.einsum("bhqd,bhkd->bhqk", q, k) / (HD ** 0.5)
    a = jax.nn.softmax(s, axis=-1)
    o = jnp.einsum("bhqk,bhkd->bhqd", a, v).transpose(0, 2, 1, 3).reshape(B, S, D)
    o = o @ p["wo"] + p["bo"]
    h1 = x + o
    mu = h1.mean(-1, keepdims=True)
    var = ((h1 - mu) ** 2).mean(-1, keepdims=True)
    h1 = (h1 - mu) / jnp.sqrt(var + EPS) * p["ln1_g"] + p["ln1_b"]
    f = jax.nn.gelu(h1 @ p["wi"] + p["bi"], approximate=False)
    f = f @ p["wo2"] + p["bo2"]
    h2 = h1 + f
    mu = h2.mean(-1, keepdims=True)
    var = ((h2 - mu) ** 2).mean(-1, keepdims=True)
    return (h2 - mu) / jnp.sqrt(var + EPS) * p["ln2_g"] + p["ln2_b"]


if __name__ == "__main__":
    key = jax.random.PRNGKey(0)
    kx, kp = jax.random.split(key)
    x = jax.random.normal(kx, (B, S, D), jnp.float32)
    params = init_params(kp)
    packed = pack_params(params)

    out = roberta_encoder_layer(x, packed)
    out = jax.block_until_ready(out)

    ref = reference_jax(x, params)
    assert out.shape == (B, S, D)
    err = float(jnp.max(jnp.abs(out - ref)))
    # bf16 MXU operands (f32 accumulation) -> tolerance looser than pure f32
    assert err < 2e-2, f"max abs err {err}"
    print("KERNEL_OK")
</pallas_src>

<mosaic_0001>
module attributes {stable_mosaic.version = 11 : i64} {
  func.func @encoder_layer_kernel(%arg0: memref<16x32xf32, #tpu.memory_space<vmem>>, %arg1: memref<32x256xbf16, #tpu.memory_space<vmem>>, %arg2: memref<128x32xbf16, #tpu.memory_space<vmem>>, %arg3: memref<72x128xf32, #tpu.memory_space<vmem>>, %arg4: memref<16x32xf32, #tpu.memory_space<vmem>>) attributes {dimension_semantics = [], scalar_prefetch = 0 : i64, scratch_operands = 0 : i64, tpu.core_type = #tpu.core_type<tc>} {
    %c0 = arith.constant 0 : index
    %c0_0 = arith.constant 0 : index
    %0 = vector.load %arg0[%c0, %c0_0] : memref<16x32xf32, #tpu.memory_space<vmem>>, vector<16x32xf32>
    %c0_1 = arith.constant 0 : index
    %c0_2 = arith.constant 0 : index
    %1 = vector.load %arg1[%c0_1, %c0_2] : memref<32x256xbf16, #tpu.memory_space<vmem>>, vector<32x256xbf16>
    %c0_3 = arith.constant 0 : index
    %c0_4 = arith.constant 0 : index
    %2 = vector.load %arg2[%c0_3, %c0_4] : memref<128x32xbf16, #tpu.memory_space<vmem>>, vector<128x32xbf16>
    %c0_5 = arith.constant 0 : index
    %c0_6 = arith.constant 0 : index
    %3 = vector.load %arg3[%c0_5, %c0_6] : memref<72x128xf32, #tpu.memory_space<vmem>>, vector<72x128xf32>
    %4 = vector.extract_strided_slice %3 {offsets = [0, 0], sizes = [1, 128], strides = [1, 1]} : vector<72x128xf32> to vector<1x128xf32>
    %5 = vector.extract_strided_slice %3 {offsets = [1, 0], sizes = [1, 32], strides = [1, 1]} : vector<72x128xf32> to vector<1x32xf32>
    %6 = vector.extract_strided_slice %3 {offsets = [2, 0], sizes = [1, 32], strides = [1, 1]} : vector<72x128xf32> to vector<1x32xf32>
    %7 = vector.extract_strided_slice %3 {offsets = [3, 0], sizes = [1, 32], strides = [1, 1]} : vector<72x128xf32> to vector<1x32xf32>
    %8 = vector.extract_strided_slice %3 {offsets = [4, 0], sizes = [1, 128], strides = [1, 1]} : vector<72x128xf32> to vector<1x128xf32>
    %9 = vector.extract_strided_slice %3 {offsets = [5, 0], sizes = [1, 32], strides = [1, 1]} : vector<72x128xf32> to vector<1x32xf32>
    %10 = vector.extract_strided_slice %3 {offsets = [6, 0], sizes = [1, 32], strides = [1, 1]} : vector<72x128xf32> to vector<1x32xf32>
    %11 = vector.extract_strided_slice %3 {offsets = [7, 0], sizes = [1, 32], strides = [1, 1]} : vector<72x128xf32> to vector<1x32xf32>
    %12 = vector.extract_strided_slice %3 {offsets = [8, 0], sizes = [64, 64], strides = [1, 1]} : vector<72x128xf32> to vector<64x64xf32>
    %13 = arith.truncf %0 : vector<16x32xf32> to vector<16x32xbf16>
    %14 = vector.extract_strided_slice %1 {offsets = [0, 0], sizes = [32, 128], strides = [1, 1]} : vector<32x256xbf16> to vector<32x128xbf16>
    %cst = arith.constant dense<0.000000e+00> : vector<16x128xf32>
    %15 = tpu.matmul %13, %14, %cst {dimension_numbers = #tpu.dot_dimension_numbers<[1], [0], [0], [1], [0, 0, 1, 1], [], []>} : vector<16x32xbf16>, vector<32x128xbf16>, vector<16x128xf32> -> vector<16x128xf32>
    %16 = vector.broadcast %4 : vector<1x128xf32> to vector<16x128xf32>
    %17 = arith.addf %15, %16 : vector<16x128xf32>
    %18 = arith.truncf %17 : vector<16x128xf32> to vector<16x128xbf16>
    %19 = vector.extract_strided_slice %18 {offsets = [0, 0], sizes = [16, 8], strides = [1, 1]} : vector<16x128xbf16> to vector<16x8xbf16>
    %20 = vector.extract_strided_slice %18 {offsets = [0, 8], sizes = [16, 8], strides = [1, 1]} : vector<16x128xbf16> to vector<16x8xbf16>
    %21 = vector.extract_strided_slice %18 {offsets = [0, 16], sizes = [16, 8], strides = [1, 1]} : vector<16x128xbf16> to vector<16x8xbf16>
    %22 = vector.extract_strided_slice %18 {offsets = [0, 24], sizes = [16, 8], strides = [1, 1]} : vector<16x128xbf16> to vector<16x8xbf16>
    %23 = tpu.concatenate %19, %20, %21, %22 in 0 : vector<16x8xbf16>, vector<16x8xbf16>, vector<16x8xbf16>, vector<16x8xbf16> -> vector<64x8xbf16>
    %24 = vector.extract_strided_slice %18 {offsets = [0, 32], sizes = [16, 8], strides = [1, 1]} : vector<16x128xbf16> to vector<16x8xbf16>
    %25 = vector.extract_strided_slice %18 {offsets = [0, 40], sizes = [16, 8], strides = [1, 1]} : vector<16x128xbf16> to vector<16x8xbf16>
    %26 = vector.extract_strided_slice %18 {offsets = [0, 48], sizes = [16, 8], strides = [1, 1]} : vector<16x128xbf16> to vector<16x8xbf16>
    %27 = vector.extract_strided_slice %18 {offsets = [0, 56], sizes = [16, 8], strides = [1, 1]} : vector<16x128xbf16> to vector<16x8xbf16>
    %28 = tpu.concatenate %24, %25, %26, %27 in 0 : vector<16x8xbf16>, vector<16x8xbf16>, vector<16x8xbf16>, vector<16x8xbf16> -> vector<64x8xbf16>
    %29 = vector.extract_strided_slice %18 {offsets = [0, 64], sizes = [16, 8], strides = [1, 1]} : vector<16x128xbf16> to vector<16x8xbf16>
    %30 = vector.extract_strided_slice %18 {offsets = [0, 72], sizes = [16, 8], strides = [1, 1]} : vector<16x128xbf16> to vector<16x8xbf16>
    %31 = vector.extract_strided_slice %18 {offsets = [0, 80], sizes = [16, 8], strides = [1, 1]} : vector<16x128xbf16> to vector<16x8xbf16>
    %32 = vector.extract_strided_slice %18 {offsets = [0, 88], sizes = [16, 8], strides = [1, 1]} : vector<16x128xbf16> to vector<16x8xbf16>
    %33 = tpu.concatenate %29, %30, %31, %32 in 0 : vector<16x8xbf16>, vector<16x8xbf16>, vector<16x8xbf16>, vector<16x8xbf16> -> vector<64x8xbf16>
    %cst_7 = arith.constant dense<0.000000e+00> : vector<64x64xf32>
    %34 = tpu.matmul %23, %28, %cst_7 {dimension_numbers = #tpu.dot_dimension_numbers<[1], [1], [0], [0], [0, 0, 1, 0], [], []>} : vector<64x8xbf16>, vector<64x8xbf16>, vector<64x64xf32> -> vector<64x64xf32>
    %cst_8 = arith.constant 0.353553385 : f32
    %35 = vector.broadcast %cst_8 : f32 to vector<64x64xf32>
    %36 = arith.mulf %34, %35 : vector<64x64xf32>
    %37 = arith.addf %36, %12 : vector<64x64xf32>
    %cst_9 = arith.constant dense<0xFF800000> : vector<64xf32>
    %38 = vector.multi_reduction <maximumf>, %37, %cst_9 [1] : vector<64x64xf32> to vector<64xf32>
    %39 = vector.shape_cast %38 : vector<64xf32> to vector<64x1xf32>
    %40 = vector.broadcast %39 : vector<64x1xf32> to vector<64x64xf32>
    %41 = arith.subf %37, %40 : vector<64x64xf32>
    %42 = math.exp %41 : vector<64x64xf32>
    %cst_10 = arith.constant dense<0.000000e+00> : vector<64xf32>
    %43 = vector.multi_reduction <add>, %42, %cst_10 [1] : vector<64x64xf32> to vector<64xf32>
    %44 = vector.shape_cast %43 : vector<64xf32> to vector<64x1xf32>
    %45 = vector.broadcast %44 : vector<64x1xf32> to vector<64x64xf32>
    %46 = arith.divf %42, %45 : vector<64x64xf32>
    %47 = arith.truncf %46 : vector<64x64xf32> to vector<64x64xbf16>
    %cst_11 = arith.constant dense<0.000000e+00> : vector<64x8xf32>
    %48 = tpu.matmul %47, %33, %cst_11 {dimension_numbers = #tpu.dot_dimension_numbers<[1], [0], [0], [1], [0, 0, 1, 1], [], []>} : vector<64x64xbf16>, vector<64x8xbf16>, vector<64x8xf32> -> vector<64x8xf32>
    %49 = vector.extract_strided_slice %48 {offsets = [0, 0], sizes = [16, 8], strides = [1, 1]} : vector<64x8xf32> to vector<16x8xf32>
    %50 = vector.extract_strided_slice %48 {offsets = [16, 0], sizes = [16, 8], strides = [1, 1]} : vector<64x8xf32> to vector<16x8xf32>
    %51 = vector.extract_strided_slice %48 {offsets = [32, 0], sizes = [16, 8], strides = [1, 1]} : vector<64x8xf32> to vector<16x8xf32>
    %52 = vector.extract_strided_slice %48 {offsets = [48, 0], sizes = [16, 8], strides = [1, 1]} : vector<64x8xf32> to vector<16x8xf32>
    %53 = tpu.concatenate %49, %50, %51, %52 in 1 : vector<16x8xf32>, vector<16x8xf32>, vector<16x8xf32>, vector<16x8xf32> -> vector<16x32xf32>
    %54 = arith.truncf %53 : vector<16x32xf32> to vector<16x32xbf16>
    %55 = vector.extract_strided_slice %1 {offsets = [0, 96], sizes = [32, 32], strides = [1, 1]} : vector<32x256xbf16> to vector<32x32xbf16>
    %cst_12 = arith.constant dense<0.000000e+00> : vector<16x32xf32>
    %56 = tpu.matmul %54, %55, %cst_12 {dimension_numbers = #tpu.dot_dimension_numbers<[1], [0], [0], [1], [0, 0, 1, 1], [], []>} : vector<16x32xbf16>, vector<32x32xbf16>, vector<16x32xf32> -> vector<16x32xf32>
    %57 = vector.broadcast %5 : vector<1x32xf32> to vector<16x32xf32>
    %58 = arith.addf %56, %57 : vector<16x32xf32>
    %59 = arith.addf %0, %58 : vector<16x32xf32>
    %cst_13 = arith.constant dense<0.000000e+00> : vector<16xf32>
    %60 = vector.multi_reduction <add>, %59, %cst_13 [1] : vector<16x32xf32> to vector<16xf32>
    %61 = vector.shape_cast %60 : vector<16xf32> to vector<16x1xf32>
    %cst_14 = arith.constant 3.200000e+01 : f32
    %62 = vector.broadcast %cst_14 : f32 to vector<16x1xf32>
    %63 = arith.divf %61, %62 : vector<16x1xf32>
    %64 = vector.broadcast %63 : vector<16x1xf32> to vector<16x32xf32>
    %65 = arith.subf %59, %64 : vector<16x32xf32>
    %66 = arith.mulf %65, %65 : vector<16x32xf32>
    %cst_15 = arith.constant dense<0.000000e+00> : vector<16xf32>
    %67 = vector.multi_reduction <add>, %66, %cst_15 [1] : vector<16x32xf32> to vector<16xf32>
    %68 = vector.shape_cast %67 : vector<16xf32> to vector<16x1xf32>
    %cst_16 = arith.constant 3.200000e+01 : f32
    %69 = vector.broadcast %cst_16 : f32 to vector<16x1xf32>
    %70 = arith.divf %68, %69 : vector<16x1xf32>
    %71 = vector.broadcast %63 : vector<16x1xf32> to vector<16x32xf32>
    %72 = arith.subf %59, %71 : vector<16x32xf32>
    %cst_17 = arith.constant 9.99999974E-6 : f32
    %73 = vector.broadcast %cst_17 : f32 to vector<16x1xf32>
    %74 = arith.addf %70, %73 : vector<16x1xf32>
    %75 = math.rsqrt %74 : vector<16x1xf32>
    %76 = vector.broadcast %75 : vector<16x1xf32> to vector<16x32xf32>
    %77 = arith.mulf %72, %76 : vector<16x32xf32>
    %78 = vector.broadcast %6 : vector<1x32xf32> to vector<16x32xf32>
    %79 = arith.mulf %77, %78 : vector<16x32xf32>
    %80 = vector.broadcast %7 : vector<1x32xf32> to vector<16x32xf32>
    %81 = arith.addf %79, %80 : vector<16x32xf32>
    %82 = arith.truncf %81 : vector<16x32xf32> to vector<16x32xbf16>
    %83 = vector.extract_strided_slice %1 {offsets = [0, 128], sizes = [32, 128], strides = [1, 1]} : vector<32x256xbf16> to vector<32x128xbf16>
    %cst_18 = arith.constant dense<0.000000e+00> : vector<16x128xf32>
    %84 = tpu.matmul %82, %83, %cst_18 {dimension_numbers = #tpu.dot_dimension_numbers<[1], [0], [0], [1], [0, 0, 1, 1], [], []>} : vector<16x32xbf16>, vector<32x128xbf16>, vector<16x128xf32> -> vector<16x128xf32>
    %85 = vector.broadcast %8 : vector<1x128xf32> to vector<16x128xf32>
    %86 = arith.addf %84, %85 : vector<16x128xf32>
    %cst_19 = arith.constant 5.000000e-01 : f32
    %87 = vector.broadcast %cst_19 : f32 to vector<16x128xf32>
    %88 = arith.mulf %87, %86 : vector<16x128xf32>
    %cst_20 = arith.constant 0.707106769 : f32
    %89 = vector.broadcast %cst_20 : f32 to vector<16x128xf32>
    %90 = arith.mulf %86, %89 : vector<16x128xf32>
    %91 = math.absf %90 : vector<16x128xf32>
    %cst_21 = arith.constant 0.327591091 : f32
    %92 = vector.broadcast %cst_21 : f32 to vector<16x128xf32>
    %93 = arith.mulf %92, %91 : vector<16x128xf32>
    %cst_22 = arith.constant 1.000000e+00 : f32
    %94 = vector.broadcast %cst_22 : f32 to vector<16x128xf32>
    %95 = arith.addf %94, %93 : vector<16x128xf32>
    %cst_23 = arith.constant 1.000000e+00 : f32
    %96 = vector.broadcast %cst_23 : f32 to vector<16x128xf32>
    %97 = arith.divf %96, %95 : vector<16x128xf32>
    %cst_24 = arith.constant 1.06140542 : f32
    %98 = vector.broadcast %cst_24 : f32 to vector<16x128xf32>
    %99 = arith.mulf %97, %98 : vector<16x128xf32>
    %cst_25 = arith.constant -1.45315206 : f32
    %100 = vector.broadcast %cst_25 : f32 to vector<16x128xf32>
    %101 = arith.addf %100, %99 : vector<16x128xf32>
    %102 = arith.mulf %97, %101 : vector<16x128xf32>
    %cst_26 = arith.constant 1.42141378 : f32
    %103 = vector.broadcast %cst_26 : f32 to vector<16x128xf32>
    %104 = arith.addf %103, %102 : vector<16x128xf32>
    %105 = arith.mulf %97, %104 : vector<16x128xf32>
    %cst_27 = arith.constant -0.284496725 : f32
    %106 = vector.broadcast %cst_27 : f32 to vector<16x128xf32>
    %107 = arith.addf %106, %105 : vector<16x128xf32>
    %108 = arith.mulf %97, %107 : vector<16x128xf32>
    %cst_28 = arith.constant 0.254829586 : f32
    %109 = vector.broadcast %cst_28 : f32 to vector<16x128xf32>
    %110 = arith.addf %109, %108 : vector<16x128xf32>
    %111 = arith.mulf %97, %110 : vector<16x128xf32>
    %cst_29 = arith.constant 0.000000e+00 : f32
    %112 = vector.broadcast %cst_29 : f32 to vector<16x128xf32>
    %113 = arith.subf %112, %91 : vector<16x128xf32>
    %114 = arith.mulf %113, %91 : vector<16x128xf32>
    %115 = math.exp %114 : vector<16x128xf32>
    %116 = arith.mulf %111, %115 : vector<16x128xf32>
    %cst_30 = arith.constant 1.000000e+00 : f32
    %117 = vector.broadcast %cst_30 : f32 to vector<16x128xf32>
    %118 = arith.subf %117, %116 : vector<16x128xf32>
    %cst_31 = arith.constant 0.000000e+00 : f32
    %119 = vector.broadcast %cst_31 : f32 to vector<16x128xf32>
    %120 = arith.cmpf oge, %90, %119 : vector<16x128xf32>
    %cst_32 = arith.constant 0.000000e+00 : f32
    %121 = vector.broadcast %cst_32 : f32 to vector<16x128xf32>
    %122 = arith.subf %121, %118 : vector<16x128xf32>
    %123 = arith.select %120, %118, %122 : vector<16x128xi1>, vector<16x128xf32>
    %cst_33 = arith.constant 1.000000e+00 : f32
    %124 = vector.broadcast %cst_33 : f32 to vector<16x128xf32>
    %125 = arith.addf %124, %123 : vector<16x128xf32>
    %126 = arith.mulf %88, %125 : vector<16x128xf32>
    %127 = arith.truncf %126 : vector<16x128xf32> to vector<16x128xbf16>
    %cst_34 = arith.constant dense<0.000000e+00> : vector<16x32xf32>
    %128 = tpu.matmul %127, %2, %cst_34 {dimension_numbers = #tpu.dot_dimension_numbers<[1], [0], [0], [1], [0, 0, 1, 1], [], []>} : vector<16x128xbf16>, vector<128x32xbf16>, vector<16x32xf32> -> vector<16x32xf32>
    %129 = vector.broadcast %9 : vector<1x32xf32> to vector<16x32xf32>
    %130 = arith.addf %128, %129 : vector<16x32xf32>
    %131 = arith.addf %81, %130 : vector<16x32xf32>
    %cst_35 = arith.constant dense<0.000000e+00> : vector<16xf32>
    %132 = vector.multi_reduction <add>, %131, %cst_35 [1] : vector<16x32xf32> to vector<16xf32>
    %133 = vector.shape_cast %132 : vector<16xf32> to vector<16x1xf32>
    %cst_36 = arith.constant 3.200000e+01 : f32
    %134 = vector.broadcast %cst_36 : f32 to vector<16x1xf32>
    %135 = arith.divf %133, %134 : vector<16x1xf32>
    %136 = vector.broadcast %135 : vector<16x1xf32> to vector<16x32xf32>
    %137 = arith.subf %131, %136 : vector<16x32xf32>
    %138 = arith.mulf %137, %137 : vector<16x32xf32>
    %cst_37 = arith.constant dense<0.000000e+00> : vector<16xf32>
    %139 = vector.multi_reduction <add>, %138, %cst_37 [1] : vector<16x32xf32> to vector<16xf32>
    %140 = vector.shape_cast %139 : vector<16xf32> to vector<16x1xf32>
    %cst_38 = arith.constant 3.200000e+01 : f32
    %141 = vector.broadcast %cst_38 : f32 to vector<16x1xf32>
    %142 = arith.divf %140, %141 : vector<16x1xf32>
    %143 = vector.broadcast %135 : vector<16x1xf32> to vector<16x32xf32>
    %144 = arith.subf %131, %143 : vector<16x32xf32>
    %cst_39 = arith.constant 9.99999974E-6 : f32
    %145 = vector.broadcast %cst_39 : f32 to vector<16x1xf32>
    %146 = arith.addf %142, %145 : vector<16x1xf32>
    %147 = math.rsqrt %146 : vector<16x1xf32>
    %148 = vector.broadcast %147 : vector<16x1xf32> to vector<16x32xf32>
    %149 = arith.mulf %144, %148 : vector<16x32xf32>
    %150 = vector.broadcast %10 : vector<1x32xf32> to vector<16x32xf32>
    %151 = arith.mulf %149, %150 : vector<16x32xf32>
    %152 = vector.broadcast %11 : vector<1x32xf32> to vector<16x32xf32>
    %153 = arith.addf %151, %152 : vector<16x32xf32>
    %c0_40 = arith.constant 0 : index
    %c0_41 = arith.constant 0 : index
    %154 = vector.load %arg4[%c0_40, %c0_41] : memref<16x32xf32, #tpu.memory_space<vmem>>, vector<16x32xf32>
    tpu.vector_store %arg4[%c0_40, %c0_41], %153 {strides = array<i32>} : memref<16x32xf32, #tpu.memory_space<vmem>>, vector<16x32xf32>,
    return
  }
}

</mosaic_0001>

<llo_original>
// kernel: tpu_custom_call.1
$region0: #{tpu_custom_call.1}
  #allocation0 [shape = 'u32[]', space=smem, size = 0x4, offset = 0x4, fixed_abs, tag = 'smem constant byte address 0x4 - core index']
  #allocation1 [shape = 'u32[144,128]{1,0:T(1,128)}', space=vmem, size = 0x12000, scoped, tag = 'internal scratch']
  %s0 = inlined_call_operand.hbm [shape: f32[16,32], index: 0, kind: input, shape index: {}]
  %s1 = inlined_call_operand.hbm [shape: bf16[32,256], index: 1, kind: input, shape index: {}]
  %s2 = inlined_call_operand.vmem [shape: bf16[128,32], index: 2, kind: input, shape index: {}]
  %s3 = inlined_call_operand.vmem [shape: f32[72,128], index: 3, kind: input, shape index: {}]
  %s4 = inlined_call_operand.hbm [shape: f32[16,32], index: 4, kind: output, shape index: {}]
  %s5 = sld [smem:[#allocation0]]
  $region34: #{tpu_custom_call.1} parent=0
    _
  %s7 = ssub.s32 1, %s5
  %s8 = scalar_select 0, %s7, %s5
  $region1: #{tpu_custom_call.1} parent=0
    #allocation2 [shape = 'u8[8192]{0}', space=vmem, size = 0x2000, scoped, tag = 'input window, operand 0, single buffered']
    #allocation3 [shape = 's32[1]{0}', space=sflag, size = 0x4, scoped, tag = 'scoped memory for tpu_custom_call.1']
    #allocation4 [shape = 's32[1]{0}', space=sflag, size = 0x4, scoped, tag = 'scoped memory for tpu_custom_call.1']
    #allocation5 [shape = 'u8[16384]{0}', space=vmem, size = 0x4000, scoped, tag = 'input window, operand 1, single buffered']
    #allocation6 [shape = 's32[1]{0}', space=sflag, size = 0x4, scoped, tag = 'scoped memory for tpu_custom_call.1']
    #allocation7 [shape = 'u8[8192]{0}', space=vmem, size = 0x2000, scoped, tag = 'output window, operand 0, single buffered']
    %9 = vsyncpa [#allocation3], 0
    %10 = vsyncpa [#allocation6], 0
    %11 = vsyncpa [#allocation4], 0
    // Predicated region
    $region2: #{tpu_custom_call.1} parent=1 // pred_check
      _
    $region3: #{tpu_custom_call.1} parent=1 // pred_check_branch
      %13 = sbr.rel (0) target = $region5
    $region4: #{tpu_custom_call.1} parent=1 // pred_region
      %s15 = ssub.s32 256, 256
      %16 = vsyncadd [#allocation3], %s15
      %s17 = sshll.u32 [#allocation2], 4
      %s18 = int_to_ptr.vmem [resolvable:$true] %s17
      %23 = dma.hbm_to_vmem [thread:$0]  %s0, 256, %s18, [#allocation3], 128, 128, 8
    $region5: #{tpu_custom_call.1} parent=1 // pred_fallthru
      _
    // Predicated region
    $region6: #{tpu_custom_call.1} parent=1 // pred_check
      _
    $region7: #{tpu_custom_call.1} parent=1 // pred_check_branch
      %25 = sbr.rel (0) target = $region9
    $region8: #{tpu_custom_call.1} parent=1 // pred_region
      %s27 = ssub.s32 512, 512
      %28 = vsyncadd [#allocation6], %s27
      %s29 = sshll.u32 [#allocation5], 4
      %s30 = int_to_ptr.vmem [resolvable:$true] %s29
      %35 = dma.hbm_to_vmem [thread:$0]  %s1, 512, %s30, [#allocation6], 128, 128, 8
    $region9: #{tpu_custom_call.1} parent=1 // pred_fallthru
      _
    // Predicated region
    $region10: #{tpu_custom_call.1} parent=1 // pred_check
      _
    $region11: #{tpu_custom_call.1} parent=1 // pred_check_branch
      %37 = sbr.rel (0) target = $region13
    $region12: #{tpu_custom_call.1} parent=1 // pred_region
      _
    $region13: #{tpu_custom_call.1} parent=1 // pred_fallthru
      _
    // Predicated region
    $region14: #{tpu_custom_call.1} parent=1 // pred_check
      _
    $region15: #{tpu_custom_call.1} parent=1 // pred_check_branch
      %39 = sbr.rel (0) target = $region17
    $region16: #{tpu_custom_call.1} parent=1 // pred_region
      _
    $region17: #{tpu_custom_call.1} parent=1 // pred_fallthru
      _
    // Predicated region
    $region18: #{tpu_custom_call.1} parent=1 // pred_check
      _
    $region19: #{tpu_custom_call.1} parent=1 // pred_check_branch
      %41 = sbr.rel (0) target = $region21
    $region20: #{tpu_custom_call.1} parent=1 // pred_region
      %42 = dma.done [#allocation3], 256
    $region21: #{tpu_custom_call.1} parent=1 // pred_fallthru
      _
    // Predicated region
    $region22: #{tpu_custom_call.1} parent=1 // pred_check
      _
    $region23: #{tpu_custom_call.1} parent=1 // pred_check_branch
      %44 = sbr.rel (0) target = $region25
    $region24: #{tpu_custom_call.1} parent=1 // pred_region
      %45 = dma.done [#allocation6], 512
    $region25: #{tpu_custom_call.1} parent=1 // pred_fallthru
      _
    %v47 = vld [vmem:[#allocation2] sm:$0xff]
    %v48 = vld [vmem:[#allocation2 + $0x8] sm:$0xff]
    %v49 = vld [vmem:[#allocation5] sm:$0xff]
    %v50 = vld [vmem:[#allocation5 + $0x8] sm:$0xff]
    %v51 = vld [vmem:[#allocation5 + $0x10] sm:$0xff]
    %v52 = vld [vmem:[#allocation5 + $0x18] sm:$0xff]
    %v53 = vld [vmem:[%s2] sm:$0xf]
    %v54 = vld [vmem:[%s2 + $0x4] sm:$0xf]
    %v55 = vld [vmem:[%s2 + $0x8] sm:$0xf]
    %v56 = vld [vmem:[%s2 + $0xc] sm:$0xf]
    %v57 = vld [vmem:[%s2 + $0x10] sm:$0xf]
    %v58 = vld [vmem:[%s2 + $0x14] sm:$0xf]
    %v59 = vld [vmem:[%s2 + $0x18] sm:$0xf]
    %v60 = vld [vmem:[%s2 + $0x1c] sm:$0xf]
    %v61 = vld [vmem:[%s2 + $0x20] sm:$0xf]
    %v62 = vld [vmem:[%s2 + $0x24] sm:$0xf]
    %v63 = vld [vmem:[%s2 + $0x28] sm:$0xf]
    %v64 = vld [vmem:[%s2 + $0x2c] sm:$0xf]
    %v65 = vld [vmem:[%s2 + $0x30] sm:$0xf]
    %v66 = vld [vmem:[%s2 + $0x34] sm:$0xf]
    %v67 = vld [vmem:[%s2 + $0x38] sm:$0xf]
    %v68 = vld [vmem:[%s2 + $0x3c] sm:$0xf]
    %v69 = vld [vmem:[%s3] sm:$0xff]
    %v70 = vld [vmem:[%s3 + $0x8] sm:$0xff]
    %v71 = vld [vmem:[%s3 + $0x10] sm:$0xff]
    %v72 = vld [vmem:[%s3 + $0x18] sm:$0xff]
    %v73 = vld [vmem:[%s3 + $0x20] sm:$0xff]
    %v74 = vld [vmem:[%s3 + $0x28] sm:$0xff]
    %v75 = vld [vmem:[%s3 + $0x30] sm:$0xff]
    %v76 = vld [vmem:[%s3 + $0x38] sm:$0xff]
    %v77 = vld [vmem:[%s3 + $0x40] sm:$0xff]
    %v78 = vpack.c.bf16 %v48, %v47
    %v79 = vlaneseq
    %v80 = vshrl.u32 %v79, 7
    %v81 = vsub.s32 0, %v80
    %v82 = vrot.slane %v69, %v81
    %v87 = vunpack.c.l.b16 %v49
    %v88 = vunpack.c.l.b16 %v50
    %v89 = vunpack.c.l.b16 %v51
    %v90 = vunpack.c.l.b16 %v52
    %v91 = vpack.c.b16 %v88, %v87
    %v92 = vpack.c.b16 %v90, %v89
    %vm95 = vcmask 261120
    %v97 = vsel %vm95, %v78, 0
    %99 = vmatprep.subr.bf16.mxu0 0
    %100 = vmatpush1.bf16.msra.mxu0 0
    %101 = vmatprep.subr.bf16.mxu0 0
    %102 = vmatpush1.bf16.msra.mxu0 0
    %103 = vmatprep.subr.bf16.mxu0 0
    %104 = vmatpush1.bf16.msra.mxu0 0
    %105 = vmatprep.subr.bf16.mxu0 0
    %106 = vmatpush1.bf16.msra.mxu0 0
    %107 = vmatprep.subr.bf16.mxu0 0
    %108 = vmatpush1.bf16.msra.mxu0 0
    %109 = vmatprep.subr.bf16.mxu0 0
    %110 = vmatpush1.bf16.msra.mxu0 0
    %111 = vmatprep.subr.bf16.mxu0 0
    %112 = vmatpush1.bf16.msra.mxu0 %v92
    %113 = vmatprep.subr.bf16.mxu0 0
    %114 = vmatpush1.bf16.msra.mxu0 %v91
    %115 = vmatprep.subr.bf16.mxu0 0
    %116 = vmatpush2.bf16.msra.mxu0 0
    %117 = vmatprep.subr.bf16.mxu0 0
    %118 = vmatpush2.bf16.msra.mxu0 0
    %119 = vmatprep.subr.bf16.mxu0 0
    %120 = vmatpush2.bf16.msra.mxu0 0
    %121 = vmatprep.subr.bf16.mxu0 0
    %122 = vmatpush2.bf16.msra.mxu0 0
    %123 = vmatprep.subr.bf16.mxu0 0
    %124 = vmatpush2.bf16.msra.mxu0 0
    %125 = vmatprep.subr.bf16.mxu0 0
    %126 = vmatpush2.bf16.msra.mxu0 0
    %127 = vmatprep.subr.bf16.mxu0 0
    %128 = vmatpush2.bf16.msra.mxu0 0
    %129 = vmatprep.subr.bf16.mxu0 0
    %130 = vmatpush2.bf16.msra.mxu0 0
    %131 = vmatprep.mubr.bf16.mxu0 0
    %132 = vmatmul.mubr.bf16.gmra.mxu0 %v97
    %v133 = vpop.f32.mrf.mxu0
    %v134 = vadd.f32 %v82, %v133
    %v135 = vpop.f32.mrf.mxu0
    %v136 = vpop.f32.mrf.mxu0
    %v137 = vadd.f32 %v82, %v136
    %v138 = vpop.f32.mrf.mxu0
    %139 = vdwg.mxu0
    %v140 = vpack.c.bf16 %v137, %v134
    %142 = vrot.lane.b32.xlu0 %v140, 120
    %v143 = vpop.permute.xlu0 %142
    %144 = vrot.lane.b32.xlu0 %v140, 112
    %v145 = vpop.permute.xlu0 %144
    %146 = vrot.lane.b32.xlu0 %v140, 104
    %v147 = vpop.permute.xlu0 %146
    %148 = vrot.lane.b32.xlu0 %v140, 96
    %v149 = vpop.permute.xlu0 %148
    %150 = vrot.lane.b32.xlu0 %v143, 96
    %v151 = vpop.permute.xlu0 %150
    %152 = vrot.lane.b32.xlu0 %v145, 96
    %v153 = vpop.permute.xlu0 %152
    %154 = vrot.lane.b32.xlu0 %v147, 96
    %v155 = vpop.permute.xlu0 %154
    %vm156 = vcmask 64512
    %v158 = vsel %vm156, %v140, 0
    %v161 = vsel %vm156, %v143, 0
    %v164 = vsel %vm156, %v145, 0
    %v167 = vsel %vm156, %v147, 0
    %v170 = vsel %vm156, %v149, 0
    %v173 = vsel %vm156, %v151, 0
    %v176 = vsel %vm156, %v153, 0
    %v179 = vsel %vm156, %v155, 0
    %181 = vmatprep.subr.bf16.mxu0 0
    %182 = vmatpush1.bf16.xpose.msra.mxu0 0
    %183 = vmatprep.subr.bf16.mxu0 0
    %184 = vmatpush1.bf16.xpose.msra.mxu0 0
    %185 = vmatprep.subr.bf16.mxu0 0
    %186 = vmatpush1.bf16.xpose.msra.mxu0 0
    %187 = vmatprep.subr.bf16.mxu0 0
    %188 = vmatpush1.bf16.xpose.msra.mxu0 0
    %189 = vmatprep.subr.bf16.mxu0 0
    %190 = vmatpush1.bf16.xpose.msra.mxu0 %v179
    %191 = vmatprep.subr.bf16.mxu0 0
    %192 = vmatpush1.bf16.xpose.msra.mxu0 %v176
    %193 = vmatprep.subr.bf16.mxu0 0
    %194 = vmatpush1.bf16.xpose.msra.mxu0 %v173
    %195 = vmatprep.subr.bf16.mxu0 0
    %196 = vmatpush1.bf16.xpose.msra.mxu0 %v170
    %197 = vmatprep.subr.bf16.mxu0 0
    %198 = vmatpush2.bf16.xpose.msra.mxu0 0
    %199 = vmatprep.subr.bf16.mxu0 0
    %200 = vmatpush2.bf16.xpose.msra.mxu0 0
    %201 = vmatprep.subr.bf16.mxu0 0
    %202 = vmatpush2.bf16.xpose.msra.mxu0 0
    %203 = vmatprep.subr.bf16.mxu0 0
    %204 = vmatpush2.bf16.xpose.msra.mxu0 0
    %205 = vmatprep.subr.bf16.mxu0 0
    %206 = vmatpush2.bf16.xpose.msra.mxu0 0
    %207 = vmatprep.subr.bf16.mxu0 0
    %208 = vmatpush2.bf16.xpose.msra.mxu0 0
    %209 = vmatprep.subr.bf16.mxu0 0
    %210 = vmatpush2.bf16.xpose.msra.mxu0 0
    %211 = vmatprep.subr.bf16.mxu0 0
    %212 = vmatpush2.bf16.xpose.msra.mxu0 0
    %213 = vmatprep.mubr.bf16.mxu0 0
    %214 = vmatmul.mubr.bf16.gmra.mxu0 %v158
    %v215 = vpop.f32.mrf.mxu0
    %v216 = vadd.f32 0.0, %v215
    %v217 = vpop.f32.mrf.mxu0
    %v218 = vpop.f32.mrf.mxu0
    %v219 = vadd.f32 0.0, %v218
    %v220 = vpop.f32.mrf.mxu0
    %221 = vmatprep.mubr.bf16.mxu0 0
    %222 = vmatmul.mubr.bf16.gmra.mxu0 %v161
    %v223 = vpop.f32.mrf.mxu0
    %v224 = vadd.f32 0.0, %v223
    %v225 = vpop.f32.mrf.mxu0
    %v226 = vpop.f32.mrf.mxu0
    %v227 = vadd.f32 0.0, %v226
    %v228 = vpop.f32.mrf.mxu0
    %229 = vmatprep.mubr.bf16.mxu0 0
    %230 = vmatmul.mubr.bf16.gmra.mxu0 %v164
    %v231 = vpop.f32.mrf.mxu0
    %v232 = vadd.f32 0.0, %v231
    %v233 = vpop.f32.mrf.mxu0
    %v234 = vpop.f32.mrf.mxu0
    %v235 = vadd.f32 0.0, %v234
    %v236 = vpop.f32.mrf.mxu0
    %237 = vmatprep.mubr.bf16.mxu0 0
    %238 = vmatmul.mubr.bf16.gmra.mxu0 %v167
    %v239 = vpop.f32.mrf.mxu0
    %v240 = vadd.f32 0.0, %v239
    %v241 = vpop.f32.mrf.mxu0
    %v242 = vpop.f32.mrf.mxu0
    %v243 = vadd.f32 0.0, %v242
    %v244 = vpop.f32.mrf.mxu0
    %245 = vdwg.mxu0
    %v246 = vmul.f32 %v216, 0.35355338
    %v247 = vmul.f32 %v219, 0.35355338
    %v248 = vmul.f32 %v224, 0.35355338
    %v249 = vmul.f32 %v227, 0.35355338
    %v250 = vmul.f32 %v232, 0.35355338
    %v251 = vmul.f32 %v235, 0.35355338
    %v252 = vmul.f32 %v240, 0.35355338
    %v253 = vmul.f32 %v243, 0.35355338
    %v254 = vadd.f32 %v246, %v70
    %v255 = vadd.f32 %v247, %v71
    %v256 = vadd.f32 %v248, %v72
    %v257 = vadd.f32 %v249, %v73
    %v258 = vadd.f32 %v250, %v74
    %v259 = vadd.f32 %v251, %v75
    %v260 = vadd.f32 %v252, %v76
    %v261 = vadd.f32 %v253, %v77
    %vm262 = vcmask 523264
    %v263 = vsel %vm262, %v254, -inf
    %264 = vmax.xlane.f32.xlu0 %v263
    %v265 = vpop.xlane.xlu0 %264
    %v266 = vsel %vm262, %v255, -inf
    %267 = vmax.xlane.f32.xlu0 %v266
    %v268 = vpop.xlane.xlu0 %267
    %v269 = vsel %vm262, %v256, -inf
    %270 = vmax.xlane.f32.xlu0 %v269
    %v271 = vpop.xlane.xlu0 %270
    %v272 = vsel %vm262, %v257, -inf
    %273 = vmax.xlane.f32.xlu0 %v272
    %v274 = vpop.xlane.xlu0 %273
    %v275 = vsel %vm262, %v258, -inf
    %276 = vmax.xlane.f32.xlu0 %v275
    %v277 = vpop.xlane.xlu0 %276
    %v278 = vsel %vm262, %v259, -inf
    %279 = vmax.xlane.f32.xlu0 %v278
    %v280 = vpop.xlane.xlu0 %279
    %v281 = vsel %vm262, %v260, -inf
    %282 = vmax.xlane.f32.xlu0 %v281
    %v283 = vpop.xlane.xlu0 %282
    %v284 = vsel %vm262, %v261, -inf
    %285 = vmax.xlane.f32.xlu0 %v284
    %v286 = vpop.xlane.xlu0 %285
    %v287 = vsub.f32 %v254, %v265
    %v288 = vsub.f32 %v255, %v268
    %v289 = vsub.f32 %v256, %v271
    %v290 = vsub.f32 %v257, %v274
    %v291 = vsub.f32 %v258, %v277
    %v292 = vsub.f32 %v259, %v280
    %v293 = vsub.f32 %v260, %v283
    %v294 = vsub.f32 %v261, %v286
    %v295 = vmul.f32 %v287, 1.442695
    %v296 = vpow.pop %v295
    %v297 = vmul.f32 %v288, 1.442695
    %v298 = vpow.pop %v297
    %v299 = vmul.f32 %v289, 1.442695
    %v300 = vpow.pop %v299
    %v301 = vmul.f32 %v290, 1.442695
    %v302 = vpow.pop %v301
    %v303 = vmul.f32 %v291, 1.442695
    %v304 = vpow.pop %v303
    %v305 = vmul.f32 %v292, 1.442695
    %v306 = vpow.pop %v305
    %v307 = vmul.f32 %v293, 1.442695
    %v308 = vpow.pop %v307
    %v309 = vmul.f32 %v294, 1.442695
    %v310 = vpow.pop %v309
    %v311 = vsel %vm262, %v296, 0.0
    %312 = vadd.xlane.f32.xlu0 %v311
    %v313 = vpop.xlane.xlu0 %312
    %v314 = vsel %vm262, %v298, 0.0
    %315 = vadd.xlane.f32.xlu0 %v314
    %v316 = vpop.xlane.xlu0 %315
    %v317 = vsel %vm262, %v300, 0.0
    %318 = vadd.xlane.f32.xlu0 %v317
    %v319 = vpop.xlane.xlu0 %318
    %v320 = vsel %vm262, %v302, 0.0
    %321 = vadd.xlane.f32.xlu0 %v320
    %v322 = vpop.xlane.xlu0 %321
    %v323 = vsel %vm262, %v304, 0.0
    %324 = vadd.xlane.f32.xlu0 %v323
    %v325 = vpop.xlane.xlu0 %324
    %v326 = vsel %vm262, %v306, 0.0
    %327 = vadd.xlane.f32.xlu0 %v326
    %v328 = vpop.xlane.xlu0 %327
    %v329 = vsel %vm262, %v308, 0.0
    %330 = vadd.xlane.f32.xlu0 %v329
    %v331 = vpop.xlane.xlu0 %330
    %v332 = vsel %vm262, %v310, 0.0
    %333 = vadd.xlane.f32.xlu0 %v332
    %v334 = vpop.xlane.xlu0 %333
    %v335 = vrcp.pop %v313
    %v336 = vmul.f32 %v296, %v335
    %v337 = vrcp.pop %v316
    %v338 = vmul.f32 %v298, %v337
    %v339 = vrcp.pop %v319
    %v340 = vmul.f32 %v300, %v339
    %v341 = vrcp.pop %v322
    %v342 = vmul.f32 %v302, %v341
    %v343 = vrcp.pop %v325
    %v344 = vmul.f32 %v304, %v343
    %v345 = vrcp.pop %v328
    %v346 = vmul.f32 %v306, %v345
    %v347 = vrcp.pop %v331
    %v348 = vmul.f32 %v308, %v347
    %v349 = vrcp.pop %v334
    %v350 = vmul.f32 %v310, %v349
    %v351 = vpack.c.bf16 %v338, %v336
    %v352 = vpack.c.bf16 %v342, %v340
    %v353 = vpack.c.bf16 %v346, %v344
    %v354 = vpack.c.bf16 %v350, %v348
    %355 = vrot.lane.b32.xlu0 %v140, 64
    %v356 = vpop.permute.xlu0 %355
    %357 = vrot.lane.b32.xlu0 %v143, 64
    %v358 = vpop.permute.xlu0 %357
    %359 = vrot.lane.b32.xlu0 %v145, 64
    %v360 = vpop.permute.xlu0 %359
    %361 = vrot.lane.b32.xlu0 %v147, 64
    %v362 = vpop.permute.xlu0 %361
    %v368 = vsel %vm262, %v351, 0
    %v371 = vsel %vm262, %v352, 0
    %v374 = vsel %vm262, %v353, 0
    %v377 = vsel %vm262, %v354, 0
    %379 = vmatprep.subr.bf16.mxu0 0
    %380 = vmatpush1.bf16.msra.mxu0 0
    %381 = vmatprep.subr.bf16.mxu0 0
    %382 = vmatpush1.bf16.msra.mxu0 0
    %383 = vmatprep.subr.bf16.mxu0 0
    %384 = vmatpush1.bf16.msra.mxu0 0
    %385 = vmatprep.subr.bf16.mxu0 0
    %386 = vmatpush1.bf16.msra.mxu0 0
    %387 = vmatprep.subr.bf16.mxu0 0
    %388 = vmatpush1.bf16.msra.mxu0 %v362
    %389 = vmatprep.subr.bf16.mxu0 0
    %390 = vmatpush1.bf16.msra.mxu0 %v360
    %391 = vmatprep.subr.bf16.mxu0 0
    %392 = vmatpush1.bf16.msra.mxu0 %v358
    %393 = vmatprep.subr.bf16.mxu0 0
    %394 = vmatpush1.bf16.msra.mxu0 %v356
    %395 = vmatprep.subr.bf16.mxu0 0
    %396 = vmatpush2.bf16.msra.mxu0 0
    %397 = vmatprep.subr.bf16.mxu0 0
    %398 = vmatpush2.bf16.msra.mxu0 0
    %399 = vmatprep.subr.bf16.mxu0 0
    %400 = vmatpush2.bf16.msra.mxu0 0
    %401 = vmatprep.subr.bf16.mxu0 0
    %402 = vmatpush2.bf16.msra.mxu0 0
    %403 = vmatprep.subr.bf16.mxu0 0
    %404 = vmatpush2.bf16.msra.mxu0 0
    %405 = vmatprep.subr.bf16.mxu0 0
    %406 = vmatpush2.bf16.msra.mxu0 0
    %407 = vmatprep.subr.bf16.mxu0 0
    %408 = vmatpush2.bf16.msra.mxu0 0
    %409 = vmatprep.subr.bf16.mxu0 0
    %410 = vmatpush2.bf16.msra.mxu0 0
    %411 = vmatprep.mubr.bf16.mxu0 0
    %412 = vmatmul.mubr.bf16.gmra.mxu0 %v368
    %v413 = vpop.f32.mrf.mxu0
    %v414 = vadd.f32 0.0, %v413
    %v415 = vpop.f32.mrf.mxu0
    %v416 = vpop.f32.mrf.mxu0
    %v417 = vadd.f32 0.0, %v416
    %v418 = vpop.f32.mrf.mxu0
    %419 = vmatprep.mubr.bf16.mxu0 0
    %420 = vmatmul.mubr.bf16.gmra.mxu0 %v371
    %v421 = vpop.f32.mrf.mxu0
    %v422 = vadd.f32 0.0, %v421
    %v423 = vpop.f32.mrf.mxu0
    %v424 = vpop.f32.mrf.mxu0
    %v425 = vadd.f32 0.0, %v424
    %v426 = vpop.f32.mrf.mxu0
    %427 = vmatprep.mubr.bf16.mxu0 0
    %428 = vmatmul.mubr.bf16.gmra.mxu0 %v374
    %v429 = vpop.f32.mrf.mxu0
    %v430 = vadd.f32 0.0, %v429
    %v431 = vpop.f32.mrf.mxu0
    %v432 = vpop.f32.mrf.mxu0
    %v433 = vadd.f32 0.0, %v432
    %v434 = vpop.f32.mrf.mxu0
    %435 = vmatprep.mubr.bf16.mxu0 0
    %436 = vmatmul.mubr.bf16.gmra.mxu0 %v377
    %v437 = vpop.f32.mrf.mxu0
    %v438 = vadd.f32 0.0, %v437
    %v439 = vpop.f32.mrf.mxu0
    %v440 = vpop.f32.mrf.mxu0
    %v441 = vadd.f32 0.0, %v440
    %v442 = vpop.f32.mrf.mxu0
    %443 = vdwg.mxu0
    %446 = vrot.lane.b32.xlu0 %v422, 8
    %v447 = vpop.permute.xlu0 %446
    %448 = vrot.lane.b32.xlu0 %v425, 8
    %v449 = vpop.permute.xlu0 %448
    %454 = vrot.lane.b32.xlu0 %v430, 16
    %v455 = vpop.permute.xlu0 %454
    %456 = vrot.lane.b32.xlu0 %v433, 16
    %v457 = vpop.permute.xlu0 %456
    %462 = vrot.lane.b32.xlu0 %v438, 24
    %v463 = vpop.permute.xlu0 %462
    %464 = vrot.lane.b32.xlu0 %v441, 24
    %v465 = vpop.permute.xlu0 %464
    %v468 = vsel %vm156, %v414, %v447
    %v469 = vsel %vm156, %v417, %v449
    %vm470 = vcmask 130048
    %v471 = vsel %vm470, %v468, %v455
    %v472 = vsel %vm470, %v469, %v457
    %vm473 = vcmask 195584
    %v474 = vsel %vm473, %v471, %v463
    %v475 = vsel %vm473, %v472, %v465
    %v476 = vpack.c.bf16 %v475, %v474
    %v477 = vlaneseq
    %v478 = vshrl.u32 %v477, 7
    %v479 = vsub.s32 1, %v478
    %v480 = vrot.slane %v69, %v479
    %481 = vrot.lane.b32.xlu0 %v91, 32
    %v482 = vpop.permute.xlu0 %481
    %483 = vrot.lane.b32.xlu0 %v92, 32
    %v484 = vpop.permute.xlu0 %483
    %v488 = vsel %vm95, %v476, 0
    %490 = vmatprep.subr.bf16.mxu0 0
    %491 = vmatpush1.bf16.msra.mxu0 0
    %492 = vmatprep.subr.bf16.mxu0 0
    %493 = vmatpush1.bf16.msra.mxu0 0
    %494 = vmatprep.subr.bf16.mxu0 0
    %495 = vmatpush1.bf16.msra.mxu0 0
    %496 = vmatprep.subr.bf16.mxu0 0
    %497 = vmatpush1.bf16.msra.mxu0 0
    %498 = vmatprep.subr.bf16.mxu0 0
    %499 = vmatpush1.bf16.msra.mxu0 0
    %500 = vmatprep.subr.bf16.mxu0 0
    %501 = vmatpush1.bf16.msra.mxu0 0
    %502 = vmatprep.subr.bf16.mxu0 0
    %503 = vmatpush1.bf16.msra.mxu0 %v484
    %504 = vmatprep.subr.bf16.mxu0 0
    %505 = vmatpush1.bf16.msra.mxu0 %v482
    %506 = vmatprep.subr.bf16.mxu0 0
    %507 = vmatpush2.bf16.msra.mxu0 0
    %508 = vmatprep.subr.bf16.mxu0 0
    %509 = vmatpush2.bf16.msra.mxu0 0
    %510 = vmatprep.subr.bf16.mxu0 0
    %511 = vmatpush2.bf16.msra.mxu0 0
    %512 = vmatprep.subr.bf16.mxu0 0
    %513 = vmatpush2.bf16.msra.mxu0 0
    %514 = vmatprep.subr.bf16.mxu0 0
    %515 = vmatpush2.bf16.msra.mxu0 0
    %516 = vmatprep.subr.bf16.mxu0 0
    %517 = vmatpush2.bf16.msra.mxu0 0
    %518 = vmatprep.subr.bf16.mxu0 0
    %519 = vmatpush2.bf16.msra.mxu0 0
    %520 = vmatprep.subr.bf16.mxu0 0
    %521 = vmatpush2.bf16.msra.mxu0 0
    %522 = vmatprep.mubr.bf16.mxu0 0
    %523 = vmatmul.mubr.bf16.gmra.mxu0 %v488
    %v524 = vpop.f32.mrf.mxu0
    %v525 = vadd.f32 %v480, %v524
    %v526 = vpop.f32.mrf.mxu0
    %v527 = vpop.f32.mrf.mxu0
    %v528 = vadd.f32 %v480, %v527
    %v529 = vpop.f32.mrf.mxu0
    %530 = vdwg.mxu0
    %v531 = vadd.f32 %v47, %v525
    %v532 = vadd.f32 %v48, %v528
    %v533 = vsel %vm95, %v531, 0.0
    %534 = vadd.xlane.f32.xlu0 %v533
    %v535 = vpop.xlane.xlu0 %534
    %v536 = vsel %vm95, %v532, 0.0
    %537 = vadd.xlane.f32.xlu0 %v536
    %v538 = vpop.xlane.xlu0 %537
    %v539 = vrcp.pop 32.0
    %v540 = vmul.f32 %v535, %v539
    %v541 = vmul.f32 %v538, %v539
    %v542 = vsub.f32 %v531, %v540
    %v543 = vsub.f32 %v532, %v541
    %v544 = vmul.f32 %v542, %v542
    %v545 = vmul.f32 %v543, %v543
    %v546 = vsel %vm95, %v544, 0.0
    %547 = vadd.xlane.f32.xlu0 %v546
    %v548 = vpop.xlane.xlu0 %547
    %v549 = vsel %vm95, %v545, 0.0
    %550 = vadd.xlane.f32.xlu0 %v549
    %v551 = vpop.xlane.xlu0 %550
    %v552 = vmul.f32 %v548, %v539
    %v553 = vmul.f32 %v551, %v539
    %v554 = vadd.f32 %v552, 1e-05
    %v555 = vadd.f32 %v553, 1e-05
    %v556 = vrsqrt.pop %v554
    %v557 = vrsqrt.pop %v555
    %v558 = vmul.f32 %v542, %v556
    %v559 = vmul.f32 %v543, %v557
    %v560 = vlaneseq
    %v561 = vshrl.u32 %v560, 7
    %v562 = vsub.s32 2, %v561
    %v563 = vrot.slane %v69, %v562
    %v564 = vmul.f32 %v558, %v563
    %v565 = vmul.f32 %v559, %v563
    %v566 = vlaneseq
    %v567 = vshrl.u32 %v566, 7
    %v568 = vsub.s32 3, %v567
    %v569 = vrot.slane %v69, %v568
    %v570 = vadd.f32 %v564, %v569
    %v571 = vadd.f32 %v565, %v569
    %v572 = vpack.c.bf16 %v571, %v570
    %v573 = vlaneseq
    %v574 = vshrl.u32 %v573, 7
    %v575 = vsub.s32 4, %v574
    %v576 = vrot.slane %v69, %v575
    %v577 = vunpack.c.h.b16 %v49
    %v578 = vunpack.c.h.b16 %v50
    %v579 = vunpack.c.h.b16 %v51
    %v580 = vunpack.c.h.b16 %v52
    %v581 = vpack.c.b16 %v578, %v577
    %v582 = vpack.c.b16 %v580, %v579
    %v586 = vsel %vm95, %v572, 0
    %588 = vmatprep.subr.bf16.mxu0 0
    %589 = vmatpush1.bf16.msra.mxu0 0
    %590 = vmatprep.subr.bf16.mxu0 0
    %591 = vmatpush1.bf16.msra.mxu0 0
    %592 = vmatprep.subr.bf16.mxu0 0
    %593 = vmatpush1.bf16.msra.mxu0 0
    %594 = vmatprep.subr.bf16.mxu0 0
    %595 = vmatpush1.bf16.msra.mxu0 0
    %596 = vmatprep.subr.bf16.mxu0 0
    %597 = vmatpush1.bf16.msra.mxu0 0
    %598 = vmatprep.subr.bf16.mxu0 0
    %599 = vmatpush1.bf16.msra.mxu0 0
    %600 = vmatprep.subr.bf16.mxu0 0
    %601 = vmatpush1.bf16.msra.mxu0 %v582
    %602 = vmatprep.subr.bf16.mxu0 0
    %603 = vmatpush1.bf16.msra.mxu0 %v581
    %604 = vmatprep.subr.bf16.mxu0 0
    %605 = vmatpush2.bf16.msra.mxu0 0
    %606 = vmatprep.subr.bf16.mxu0 0
    %607 = vmatpush2.bf16.msra.mxu0 0
    %608 = vmatprep.subr.bf16.mxu0 0
    %609 = vmatpush2.bf16.msra.mxu0 0
    %610 = vmatprep.subr.bf16.mxu0 0
    %611 = vmatpush2.bf16.msra.mxu0 0
    %612 = vmatprep.subr.bf16.mxu0 0
    %613 = vmatpush2.bf16.msra.mxu0 0
    %614 = vmatprep.subr.bf16.mxu0 0
    %615 = vmatpush2.bf16.msra.mxu0 0
    %616 = vmatprep.subr.bf16.mxu0 0
    %617 = vmatpush2.bf16.msra.mxu0 0
    %618 = vmatprep.subr.bf16.mxu0 0
    %619 = vmatpush2.bf16.msra.mxu0 0
    %620 = vmatprep.mubr.bf16.mxu0 0
    %621 = vmatmul.mubr.bf16.gmra.mxu0 %v586
    %v622 = vpop.f32.mrf.mxu0
    %v623 = vadd.f32 %v576, %v622
    %v624 = vpop.f32.mrf.mxu0
    %v625 = vpop.f32.mrf.mxu0
    %v626 = vadd.f32 %v576, %v625
    %v627 = vpop.f32.mrf.mxu0
    %628 = vdwg.mxu0
    %v629 = vmul.f32 %v623, 0.5
    %v630 = vmul.f32 %v626, 0.5
    %v631 = vmul.f32 %v623, 0.70710677
    %v632 = vmul.f32 %v626, 0.70710677
    %v633 = vand.u32 2147483647, %v631
    %v634 = vand.u32 2147483647, %v632
    %v635 = vmul.f32 %v633, 0.3275911
    %v636 = vmul.f32 %v634, 0.3275911
    %v637 = vadd.f32 %v635, 1.0
    %v638 = vadd.f32 %v636, 1.0
    %v639 = vrcp.pop %v637
    %v640 = vmul.f32 1.0, %v639
    %v641 = vrcp.pop %v638
    %v642 = vmul.f32 1.0, %v641
    %v643 = vmul.f32 %v640, 1.0614054
    %v644 = vmul.f32 %v642, 1.0614054
    %v645 = vadd.f32 %v643, -1.4531521
    %v646 = vadd.f32 %v644, -1.4531521
    %v647 = vmul.f32 %v640, %v645
    %v648 = vmul.f32 %v642, %v646
    %v649 = vadd.f32 %v647, 1.4214138
    %v650 = vadd.f32 %v648, 1.4214138
    %v651 = vmul.f32 %v640, %v649
    %v652 = vmul.f32 %v642, %v650
    %v653 = vadd.f32 %v651, -0.28449672
    %v654 = vadd.f32 %v652, -0.28449672
    %v655 = vmul.f32 %v640, %v653
    %v656 = vmul.f32 %v642, %v654
    %v657 = vadd.f32 %v655, 0.2548296
    %v658 = vadd.f32 %v656, 0.2548296
    %v659 = vmul.f32 %v640, %v657
    %v660 = vmul.f32 %v642, %v658
    %v661 = vsub.f32 0.0, %v633
    %v662 = vsub.f32 0.0, %v634
    %v663 = vmul.f32 %v661, %v633
    %v664 = vmul.f32 %v662, %v634
    %v665 = vmul.f32 %v663, 1.442695
    %v666 = vpow.pop %v665
    %v667 = vmul.f32 %v664, 1.442695
    %v668 = vpow.pop %v667
    %v669 = vmul.f32 %v659, %v666
    %v670 = vmul.f32 %v660, %v668
    %v671 = vsub.f32 1.0, %v669
    %v672 = vsub.f32 1.0, %v670
    %vm673 = vcmp.ge.f32.partialorder %v631, 0.0
    %vm674 = vcmp.ge.f32.partialorder %v632, 0.0
    %v675 = vsub.f32 0.0, %v671
    %v676 = vsub.f32 0.0, %v672
    %v677 = vsel %vm673, %v671, %v675
    %v678 = vsel %vm674, %v672, %v676
    %v679 = vadd.f32 %v677, 1.0
    %v680 = vadd.f32 %v678, 1.0
    %v681 = vmul.f32 %v629, %v679
    %v682 = vmul.f32 %v630, %v680
    %v683 = vpack.c.bf16 %v682, %v681
    %v684 = vlaneseq
    %v685 = vshrl.u32 %v684, 7
    %v686 = vsub.s32 5, %v685
    %v687 = vrot.slane %v69, %v686
    %v704 = vunpack.c.l.b16 %v53
    %v705 = vunpack.c.l.b16 %v54
    %v706 = vunpack.c.l.b16 %v55
    %v707 = vunpack.c.l.b16 %v56
    %v708 = vunpack.c.l.b16 %v57
    %v709 = vunpack.c.l.b16 %v58
    %v710 = vunpack.c.l.b16 %v59
    %v711 = vunpack.c.l.b16 %v60
    %v712 = vunpack.c.l.b16 %v61
    %v713 = vunpack.c.l.b16 %v62
    %v714 = vunpack.c.l.b16 %v63
    %v715 = vunpack.c.l.b16 %v64
    %v716 = vunpack.c.l.b16 %v65
    %v717 = vunpack.c.l.b16 %v66
    %v718 = vunpack.c.l.b16 %v67
    %v719 = vunpack.c.l.b16 %v68
    %v720 = vpack.c.b16 %v705, %v704
    %v721 = vpack.c.b16 %v707, %v706
    %v722 = vpack.c.b16 %v709, %v708
    %v723 = vpack.c.b16 %v711, %v710
    %v724 = vpack.c.b16 %v713, %v712
    %v725 = vpack.c.b16 %v715, %v714
    %v726 = vpack.c.b16 %v717, %v716
    %v727 = vpack.c.b16 %v719, %v718
    %736 = vmatprep.subr.bf16.mxu0 0
    %737 = vmatpush1.bf16.msra.mxu0 %v727
    %738 = vmatprep.subr.bf16.mxu0 0
    %739 = vmatpush1.bf16.msra.mxu0 %v726
    %740 = vmatprep.subr.bf16.mxu0 0
    %741 = vmatpush1.bf16.msra.mxu0 %v725
    %742 = vmatprep.subr.bf16.mxu0 0
    %743 = vmatpush1.bf16.msra.mxu0 %v724
    %744 = vmatprep.subr.bf16.mxu0 0
    %745 = vmatpush1.bf16.msra.mxu0 %v723
    %746 = vmatprep.subr.bf16.mxu0 0
    %747 = vmatpush1.bf16.msra.mxu0 %v722
    %748 = vmatprep.subr.bf16.mxu0 0
    %749 = vmatpush1.bf16.msra.mxu0 %v721
    %750 = vmatprep.subr.bf16.mxu0 0
    %751 = vmatpush1.bf16.msra.mxu0 %v720
    %752 = vmatprep.subr.bf16.mxu0 0
    %753 = vmatpush2.bf16.msra.mxu0 0
    %754 = vmatprep.subr.bf16.mxu0 0
    %755 = vmatpush2.bf16.msra.mxu0 0
    %756 = vmatprep.subr.bf16.mxu0 0
    %757 = vmatpush2.bf16.msra.mxu0 0
    %758 = vmatprep.subr.bf16.mxu0 0
    %759 = vmatpush2.bf16.msra.mxu0 0
    %760 = vmatprep.subr.bf16.mxu0 0
    %761 = vmatpush2.bf16.msra.mxu0 0
    %762 = vmatprep.subr.bf16.mxu0 0
    %763 = vmatpush2.bf16.msra.mxu0 0
    %764 = vmatprep.subr.bf16.mxu0 0
    %765 = vmatpush2.bf16.msra.mxu0 0
    %766 = vmatprep.subr.bf16.mxu0 0
    %767 = vmatpush2.bf16.msra.mxu0 0
    %768 = vmatprep.mubr.bf16.mxu0 0
    %769 = vmatmul.mubr.bf16.gmra.mxu0 %v683
    %v770 = vpop.f32.mrf.mxu0
    %v771 = vadd.f32 %v687, %v770
    %v772 = vpop.f32.mrf.mxu0
    %v773 = vpop.f32.mrf.mxu0
    %v774 = vadd.f32 %v687, %v773
    %v775 = vpop.f32.mrf.mxu0
    %776 = vdwg.mxu0
    %v777 = vadd.f32 %v570, %v771
    %v778 = vadd.f32 %v571, %v774
    %v779 = vsel %vm95, %v777, 0.0
    %780 = vadd.xlane.f32.xlu0 %v779
    %v781 = vpop.xlane.xlu0 %780
    %v782 = vsel %vm95, %v778, 0.0
    %783 = vadd.xlane.f32.xlu0 %v782
    %v784 = vpop.xlane.xlu0 %783
    %v785 = vmul.f32 %v781, %v539
    %v786 = vmul.f32 %v784, %v539
    %v787 = vsub.f32 %v777, %v785
    %v788 = vsub.f32 %v778, %v786
    %v789 = vmul.f32 %v787, %v787
    %v790 = vmul.f32 %v788, %v788
    %v791 = vsel %vm95, %v789, 0.0
    %792 = vadd.xlane.f32.xlu0 %v791
    %v793 = vpop.xlane.xlu0 %792
    %v794 = vsel %vm95, %v790, 0.0
    %795 = vadd.xlane.f32.xlu0 %v794
    %v796 = vpop.xlane.xlu0 %795
    %v797 = vmul.f32 %v793, %v539
    %v798 = vmul.f32 %v796, %v539
    %v799 = vadd.f32 %v797, 1e-05
    %v800 = vadd.f32 %v798, 1e-05
    %v801 = vrsqrt.pop %v799
    %v802 = vrsqrt.pop %v800
    %v803 = vmul.f32 %v787, %v801
    %v804 = vmul.f32 %v788, %v802
    %v805 = vlaneseq
    %v806 = vshrl.u32 %v805, 7
    %v807 = vsub.s32 6, %v806
    %v808 = vrot.slane %v69, %v807
    %v809 = vmul.f32 %v803, %v808
    %v810 = vmul.f32 %v804, %v808
    %v811 = vlaneseq
    %v812 = vshrl.u32 %v811, 7
    %v813 = vsub.s32 7, %v812
    %v814 = vrot.slane %v69, %v813
    %v815 = vadd.f32 %v809, %v814
    %v816 = vadd.f32 %v810, %v814
    %817 = vst.msk [vmem:[#allocation7] sm:$0xff] %vm95, %v815
    %818 = vst.msk [vmem:[#allocation7 + $0x8] sm:$0xff] %vm95, %v816
    // Predicated region
    $region26: #{tpu_custom_call.1} parent=1 // pred_check
      _
    $region27: #{tpu_custom_call.1} parent=1 // pred_check_branch
      %820 = sbr.rel (0) target = $region29
    $region28: #{tpu_custom_call.1} parent=1 // pred_region
      %s822 = ssub.s32 256, 256
      %823 = vsyncadd [#allocation4], %s822
      %s824 = sshll.u32 [#allocation7], 4
      %s825 = int_to_ptr.vmem [resolvable:$true] %s824
      %830 = dma.vmem_to_hbm [thread:$0]  %s825, 256, %s4, [#allocation4], 128, 128, 8
    $region29: #{tpu_custom_call.1} parent=1 // pred_fallthru
      _
    // Predicated region
    $region30: #{tpu_custom_call.1} parent=1 // pred_check
      _
    $region31: #{tpu_custom_call.1} parent=1 // pred_check_branch
      %832 = sbr.rel (0) target = $region33
    $region32: #{tpu_custom_call.1} parent=1 // pred_region
      %833 = dma.done [#allocation4], 256
    $region33: #{tpu_custom_call.1} parent=1 // pred_fallthru
      _
    %834 = vsyncpa [#allocation3], 1
    %835 = vsyncpa [#allocation6], 1
    %836 = vsyncpa [#allocation4], 1

</llo_original>
